<compile_context>
chip_gen: v6e
topology: v6e:2x2x1
jax: 0.10.0
libtpu: 0.0.40
codegen_flags: <defaults>
</compile_context>

<pallas_src>
import math

import jax
import jax.numpy as jnp
from jax.experimental import pallas as pl
from jax.experimental.pallas import tpu as pltpu


def _default_vmem_limit_bytes():
    """Generation-aware VMEM budget (v5e/v6e: 128 MiB physical, v7x: 64 MiB)."""
    try:
        cap = int(pltpu.get_tpu_info().vmem_capacity_bytes)
    except Exception:  # info query unavailable -> conservative (v7x-sized) default
        cap = 64 * 1024 * 1024
    return min(int(cap * 0.85), 112 * 1024 * 1024)


def _make_qkv_proj_kernel(E, heads, tp, scale, compute_dtype):
    """x -> (scaled Q | K | V), head-split into (heads, tp, hs) compute-dtype blocks."""
    hs = E // heads
    cdt = jnp.dtype(compute_dtype)

    def kernel(x_ref, w_ref, b_ref, q_ref, k_ref, v_ref):
        xt = x_ref[0].astype(cdt)                                       # (tp, E)
        qkv = jnp.dot(xt, w_ref[...],
                      preferred_element_type=jnp.float32) + b_ref[...]  # (tp, 3E) f32
        # Head split happens ONCE per token here, so the attention kernel's inner
        # loop never does lane slicing / relayout.
        for h in range(heads):                                          # static small loop
            lo = h * hs
            q_ref[0, h] = (qkv[:, lo:lo + hs] * scale).astype(cdt)      # softmax scale folded into Q
            k_ref[0, h] = qkv[:, E + lo:E + lo + hs].astype(cdt)
            v_ref[0, h] = qkv[:, 2 * E + lo:2 * E + lo + hs].astype(cdt)

    return kernel


def _make_attn_kernel(E, heads, tq, tk, compute_dtype):
    """Flash attention (online softmax, causal) + residual + c_proj + LayerNorm."""
    hs = E // heads
    neg_big = -1e30                 # finite mask value (no -inf - -inf NaN hazard)
    cdt = jnp.dtype(compute_dtype)
    bf16_math = cdt == jnp.dtype(jnp.bfloat16)

    def kernel(xq_ref, qh_ref, kh_ref, vh_ref, wp_ref, bp_ref, g_ref, bt_ref,
               o_ref, m_sc, l_sc, acc_sc, attn_sc):
        qi = pl.program_id(1)
        ki = pl.program_id(2)
        nk = pl.num_programs(2)

        @pl.when(ki == 0)
        def _init():
            m_sc[...] = jnp.full_like(m_sc, neg_big)
            l_sc[...] = jnp.zeros_like(l_sc)
            acc_sc[...] = jnp.zeros_like(acc_sc)

        # KV tiles entirely in the causal future are dead: compute is skipped here and
        # their index_map is clamped in the wrapper so no new DMA is issued either.
        @pl.when(ki * tk <= qi * tq + (tq - 1))
        def _update():
            qh = qh_ref[0]                                              # (heads, tq, hs) cdt (pre-scaled)
            kh = kh_ref[0]                                              # (heads, tk, hs) cdt
            vh = vh_ref[0]                                              # (heads, tk, hs) cdt
            s = jnp.einsum("hqd,hkd->hqk", qh, kh,
                           preferred_element_type=jnp.float32)          # (heads, tq, tk) f32
            rows = qi * tq + jax.lax.broadcasted_iota(jnp.int32, (tq, tk), 0)
            cols = ki * tk + jax.lax.broadcasted_iota(jnp.int32, (tq, tk), 1)
            s = jnp.where(cols <= rows, s, neg_big)                     # causal mask (broadcast over heads)

            m_prev = m_sc[...]                                          # (heads, tq, 1)
            m_new = jnp.maximum(m_prev, jnp.max(s, axis=-1, keepdims=True))
            alpha = jnp.exp(m_prev - m_new)
            if bf16_math:
                # bf16 exponent (bf16 EUP path on v6e/v7x); row statistics stay in f32.
                p = jnp.exp((s - m_new).astype(cdt))
                l_add = jnp.sum(p.astype(jnp.float32), axis=-1, keepdims=True)
            else:
                p32 = jnp.exp(s - m_new)
                l_add = jnp.sum(p32, axis=-1, keepdims=True)
                p = p32.astype(cdt)
            l_sc[...] = alpha * l_sc[...] + l_add
            acc_sc[...] = alpha * acc_sc[...] + jnp.einsum(
                "hqk,hkd->hqd", p, vh, preferred_element_type=jnp.float32)
            m_sc[...] = m_new

        @pl.when(ki == nk - 1)
        def _finalize():
            # approx reciprocal only on the bf16 path; exact on the f32 path.
            inv_l = pl.reciprocal(l_sc[...], approx=bf16_math)
            attn = acc_sc[...] * inv_l                                  # (heads, tq, hs) f32
            for h in range(heads):                                      # lane-dense (tq, E) slab
                attn_sc[:, h * hs:(h + 1) * hs] = attn[h]
            y = attn_sc[...] + xq_ref[0]                                # residual (f32)
            proj = jnp.dot(y.astype(cdt), wp_ref[...],
                           preferred_element_type=jnp.float32) + bp_ref[...]
            mean = jnp.mean(proj, axis=-1, keepdims=True)
            cent = proj - mean
            var = jnp.mean(cent * cent, axis=-1, keepdims=True)
            normed = cent * jax.lax.rsqrt(var + 1e-6)
            o_ref[0] = (normed * g_ref[...] + bt_ref[...]).astype(o_ref.dtype)

    return kernel


def mhsa_v2(x, params, heads, *, compute_dtype=jnp.bfloat16, tq=None, tk=None,
            out_dtype=jnp.float32, vmem_limit_bytes=None):
    B, T, E = x.shape
    assert E % heads == 0
    hs = E // heads
    # v6e/v7x MXU is 256-wide -> default 256 tiles; on v5e (4x128^2 MXU) tq=tk=128 is
    # usually enough -- pass explicitly if needed.
    if tq is None:
        tq = T if T <= 256 else 256
    if tk is None:
        tk = T if T <= 256 else 256
    assert T % tq == 0 and T % tk == 0, "T must be divisible by q/kv tile sizes"
    if vmem_limit_bytes is None:
        vmem_limit_bytes = _default_vmem_limit_bytes()

    cdt = jnp.dtype(compute_dtype)
    f32 = jnp.float32
    scale = 1.0 / math.sqrt(T)   # module scales by 1/sqrt(T), not 1/sqrt(head_size) (intentional)

    # Cast weights once outside the kernels; fuse Q|K|V projections into a single (E, 3E) matmul.
    wqkv = jnp.concatenate([params["wq"], params["wk"], params["wv"]], axis=1).astype(cdt)
    bqkv = jnp.concatenate([params["bq"], params["bk"], params["bv"]], axis=1).astype(f32)
    wp = params["wp"].astype(cdt)
    bp = params["bp"].astype(f32)
    gamma = params["gamma"].astype(f32)
    beta = params["beta"].astype(f32)
    xf = x.astype(f32)

    cparams2 = pltpu.CompilerParams(
        dimension_semantics=("parallel", "parallel"),
        vmem_limit_bytes=vmem_limit_bytes)
    cparams3 = pltpu.CompilerParams(
        dimension_semantics=("parallel", "parallel", "arbitrary"),
        vmem_limit_bytes=vmem_limit_bytes)

    # ---- Prologue: QKV projection (once per token), head-split compute-dtype outputs ----
    tp = tq
    qkv_kernel = _make_qkv_proj_kernel(E, heads, tp, scale, cdt)
    head_shape = jax.ShapeDtypeStruct((B, heads, T, hs), cdt)
    q_h, k_h, v_h = pl.pallas_call(
        qkv_kernel,
        out_shape=(head_shape, head_shape, head_shape),
        grid_spec=pltpu.PrefetchScalarGridSpec(
            num_scalar_prefetch=0,
            grid=(B, T // tp),
            in_specs=[
                pl.BlockSpec((1, tp, E), lambda b, t: (b, t, 0)),       # x tokens
                pl.BlockSpec((E, 3 * E), lambda b, t: (0, 0)),          # wqkv
                pl.BlockSpec((1, 3 * E), lambda b, t: (0, 0)),          # bqkv
            ],
            out_specs=[pl.BlockSpec((1, heads, tp, hs), lambda b, t: (b, 0, t, 0))] * 3,
        ),
        compiler_params=cparams2,
    )(xf, wqkv, bqkv)

    # ---- Main kernel: flash attention + residual + c_proj + LayerNorm ----
    nq, nk = T // tq, T // tk

    def kv_index(b, q, k):
        # Clamp to the causal boundary: fully-masked KV steps re-request the same block,
        # so they cost no DMA (compute is skipped by the pl.when guard in the kernel).
        last = (q * tq + (tq - 1)) // tk
        return (b, 0, jnp.minimum(k, last), 0)

    attn_kernel = _make_attn_kernel(E, heads, tq, tk, cdt)
    out = pl.pallas_call(
        attn_kernel,
        out_shape=jax.ShapeDtypeStruct((B, T, E), out_dtype),
        grid_spec=pltpu.PrefetchScalarGridSpec(
            num_scalar_prefetch=0,
            grid=(B, nq, nk),
            in_specs=[
                pl.BlockSpec((1, tq, E), lambda b, q, k: (b, q, 0)),             # x (residual rows)
                pl.BlockSpec((1, heads, tq, hs), lambda b, q, k: (b, 0, q, 0)),  # Q heads (pre-scaled)
                pl.BlockSpec((1, heads, tk, hs), kv_index),                      # K heads
                pl.BlockSpec((1, heads, tk, hs), kv_index),                      # V heads
                pl.BlockSpec((E, E), lambda b, q, k: (0, 0)),                    # wp (c_proj)
                pl.BlockSpec((1, E), lambda b, q, k: (0, 0)),                    # bp
                pl.BlockSpec((1, E), lambda b, q, k: (0, 0)),                    # gamma
                pl.BlockSpec((1, E), lambda b, q, k: (0, 0)),                    # beta
            ],
            out_specs=pl.BlockSpec((1, tq, E), lambda b, q, k: (b, q, 0)),
            scratch_shapes=[
                pltpu.VMEM((heads, tq, 1), f32),    # running max m
                pltpu.VMEM((heads, tq, 1), f32),    # running sum l
                pltpu.VMEM((heads, tq, hs), f32),   # unnormalized output accumulator
                pltpu.VMEM((tq, E), f32),           # lane-dense attention slab
            ],
        ),
        compiler_params=cparams3,
    )(xf, q_h, k_h, v_h, wp, bp, gamma, beta)
    return out


def reference_mhsa(x, params, heads):
    """Pure-JAX reference of the torch forward (eval mode)."""
    B, T, E = x.shape
    hs = E // heads

    q = x @ params["wq"] + params["bq"][0]
    k = x @ params["wk"] + params["bk"][0]
    v = x @ params["wv"] + params["bv"][0]

    def split(t):
        return t.reshape(B, T, heads, hs).transpose(0, 2, 1, 3)  # (B,H,T,hs)

    q, k, v = split(q), split(k), split(v)
    atten = jnp.einsum("bhtd,bhsd->bhts", q, k) * (1.0 / math.sqrt(T))
    tri = jnp.tril(jnp.ones((T, T)))
    atten = jnp.where(tri == 0, -jnp.inf, atten)
    atten = jax.nn.softmax(atten, axis=-1)
    out = jnp.einsum("bhts,bhsd->bhtd", atten, v)
    out = out.transpose(0, 2, 1, 3).reshape(B, T, E)
    y = (out + x) @ params["wp"] + params["bp"][0]
    mean = y.mean(-1, keepdims=True)
    var = ((y - mean) ** 2).mean(-1, keepdims=True)
    normed = (y - mean) / jnp.sqrt(var + 1e-6)
    return normed * params["gamma"][0] + params["beta"][0]


if __name__ == "__main__":
    B, T, E, HEADS = 2, 16, 32, 4
    TQ = TK = 8   # 2 q-tiles x 2 kv-tiles: exercises online softmax + causal tile skip/clamp

    key = jax.random.PRNGKey(0)
    keys = jax.random.split(key, 11)

    def w(k):
        return (0.05 * jax.random.normal(k, (E, E))).astype(jnp.float32)

    def b(k):
        return (0.05 * jax.random.normal(k, (1, E))).astype(jnp.float32)

    params = {
        "wq": w(keys[0]), "bq": b(keys[1]),
        "wk": w(keys[2]), "bk": b(keys[3]),
        "wv": w(keys[4]), "bv": b(keys[5]),
        "wp": w(keys[6]), "bp": b(keys[7]),
        "gamma": (1.0 + 0.05 * jax.random.normal(keys[8], (1, E))).astype(jnp.float32),
        "beta": (0.05 * jax.random.normal(keys[9], (1, E))).astype(jnp.float32),
    }
    x = jax.random.normal(keys[10], (B, T, E), dtype=jnp.float32)

    ref = reference_mhsa(x, params, HEADS)

    # 1) f32 compute path: tight check of the tiled / online-softmax algorithm.
    out_f32 = jax.block_until_ready(
        mhsa_v2(x, params, HEADS, compute_dtype=jnp.float32, tq=TQ, tk=TK))
    assert out_f32.shape == (B, T, E)
    assert jnp.allclose(out_f32, ref, atol=1e-3, rtol=1e-3), "f32 path mismatch vs reference"

    # 2) default bf16-MXU path (perf config): looser tolerance for bf16 operands.
    out_bf16 = jax.block_until_ready(mhsa_v2(x, params, HEADS, tq=TQ, tk=TK))
    assert out_bf16.shape == (B, T, E)
    assert jnp.allclose(out_bf16, ref, atol=5e-2, rtol=5e-2), "bf16 path mismatch vs reference"

    print("KERNEL_OK")
</pallas_src>

<mosaic_0001>
module attributes {stable_mosaic.version = 11 : i64} {
  func.func @kernel(%arg0: i32, %arg1: i32, %arg2: memref<1x8x32xf32, #tpu.memory_space<vmem>>, %arg3: memref<32x96xf32, #tpu.memory_space<vmem>>, %arg4: memref<1x96xf32, #tpu.memory_space<vmem>>, %arg5: memref<1x4x8x8xf32, #tpu.memory_space<vmem>>, %arg6: memref<1x4x8x8xf32, #tpu.memory_space<vmem>>, %arg7: memref<1x4x8x8xf32, #tpu.memory_space<vmem>>) attributes {dimension_semantics = [#tpu.dimension_semantics<parallel>, #tpu.dimension_semantics<parallel>], iteration_bounds = array<i64: 2, 2>, scalar_prefetch = 0 : i64, scratch_operands = 0 : i64, tpu.core_type = #tpu.core_type<tc>, window_params = [{transform_indices = @transform_0, window_bounds = array<i64: 1, 8, 32>}, {pipeline_mode = #tpu.pipeline_mode<synchronous>, transform_indices = @transform_1, window_bounds = array<i64: 32, 96>}, {pipeline_mode = #tpu.pipeline_mode<synchronous>, transform_indices = @transform_2, window_bounds = array<i64: 1, 96>}, {transform_indices = @transform_3, window_bounds = array<i64: 1, 4, 8, 8>}, {transform_indices = @transform_4, window_bounds = array<i64: 1, 4, 8, 8>}, {transform_indices = @transform_5, window_bounds = array<i64: 1, 4, 8, 8>}]} {
    %c0 = arith.constant 0 : index
    %c0_0 = arith.constant 0 : index
    %c0_1 = arith.constant 0 : index
    %0 = vector.load %arg2[%c0, %c0_0, %c0_1] : memref<1x8x32xf32, #tpu.memory_space<vmem>>, vector<1x8x32xf32>
    %1 = vector.shape_cast %0 : vector<1x8x32xf32> to vector<8x32xf32>
    %c0_2 = arith.constant 0 : index
    %c0_3 = arith.constant 0 : index
    %2 = vector.load %arg3[%c0_2, %c0_3] : memref<32x96xf32, #tpu.memory_space<vmem>>, vector<32x96xf32>
    %cst = arith.constant dense<0.000000e+00> : vector<8x96xf32>
    %3 = tpu.matmul %1, %2, %cst {dimension_numbers = #tpu.dot_dimension_numbers<[1], [0], [0], [1], [0, 0, 1, 1], [], []>} : vector<8x32xf32>, vector<32x96xf32>, vector<8x96xf32> -> vector<8x96xf32>
    %c0_4 = arith.constant 0 : index
    %c0_5 = arith.constant 0 : index
    %4 = vector.load %arg4[%c0_4, %c0_5] : memref<1x96xf32, #tpu.memory_space<vmem>>, vector<1x96xf32>
    %5 = vector.broadcast %4 : vector<1x96xf32> to vector<8x96xf32>
    %6 = arith.addf %3, %5 : vector<8x96xf32>
    %7 = vector.extract_strided_slice %6 {offsets = [0, 0], sizes = [8, 8], strides = [1, 1]} : vector<8x96xf32> to vector<8x8xf32>
    %cst_6 = arith.constant 2.500000e-01 : f32
    %8 = vector.broadcast %cst_6 : f32 to vector<8x8xf32>
    %9 = arith.mulf %7, %8 : vector<8x8xf32>
    %c0_7 = arith.constant 0 : index
    %c0_8 = arith.constant 0 : index
    %c0_9 = arith.constant 0 : index
    %c0_10 = arith.constant 0 : index
    %10 = vector.load %arg5[%c0_7, %c0_8, %c0_9, %c0_10] : memref<1x4x8x8xf32, #tpu.memory_space<vmem>>, vector<1x1x8x8xf32>
    %11 = vector.shape_cast %10 : vector<1x1x8x8xf32> to vector<8x8xf32>
    %12 = vector.shape_cast %9 : vector<8x8xf32> to vector<1x1x8x8xf32>
    tpu.vector_store %arg5[%c0_7, %c0_8, %c0_9, %c0_10], %12 {strides = array<i32>} : memref<1x4x8x8xf32, #tpu.memory_space<vmem>>, vector<1x1x8x8xf32>,
    %13 = vector.extract_strided_slice %6 {offsets = [0, 32], sizes = [8, 8], strides = [1, 1]} : vector<8x96xf32> to vector<8x8xf32>
    %c0_11 = arith.constant 0 : index
    %c0_12 = arith.constant 0 : index
    %c0_13 = arith.constant 0 : index
    %c0_14 = arith.constant 0 : index
    %14 = vector.load %arg6[%c0_11, %c0_12, %c0_13, %c0_14] : memref<1x4x8x8xf32, #tpu.memory_space<vmem>>, vector<1x1x8x8xf32>
    %15 = vector.shape_cast %14 : vector<1x1x8x8xf32> to vector<8x8xf32>
    %16 = vector.shape_cast %13 : vector<8x8xf32> to vector<1x1x8x8xf32>
    tpu.vector_store %arg6[%c0_11, %c0_12, %c0_13, %c0_14], %16 {strides = array<i32>} : memref<1x4x8x8xf32, #tpu.memory_space<vmem>>, vector<1x1x8x8xf32>,
    %17 = vector.extract_strided_slice %6 {offsets = [0, 64], sizes = [8, 8], strides = [1, 1]} : vector<8x96xf32> to vector<8x8xf32>
    %c0_15 = arith.constant 0 : index
    %c0_16 = arith.constant 0 : index
    %c0_17 = arith.constant 0 : index
    %c0_18 = arith.constant 0 : index
    %18 = vector.load %arg7[%c0_15, %c0_16, %c0_17, %c0_18] : memref<1x4x8x8xf32, #tpu.memory_space<vmem>>, vector<1x1x8x8xf32>
    %19 = vector.shape_cast %18 : vector<1x1x8x8xf32> to vector<8x8xf32>
    %20 = vector.shape_cast %17 : vector<8x8xf32> to vector<1x1x8x8xf32>
    tpu.vector_store %arg7[%c0_15, %c0_16, %c0_17, %c0_18], %20 {strides = array<i32>} : memref<1x4x8x8xf32, #tpu.memory_space<vmem>>, vector<1x1x8x8xf32>,
    %21 = vector.extract_strided_slice %6 {offsets = [0, 8], sizes = [8, 8], strides = [1, 1]} : vector<8x96xf32> to vector<8x8xf32>
    %cst_19 = arith.constant 2.500000e-01 : f32
    %22 = vector.broadcast %cst_19 : f32 to vector<8x8xf32>
    %23 = arith.mulf %21, %22 : vector<8x8xf32>
    %c0_20 = arith.constant 0 : index
    %c1 = arith.constant 1 : index
    %c0_21 = arith.constant 0 : index
    %c0_22 = arith.constant 0 : index
    %24 = vector.load %arg5[%c0_20, %c1, %c0_21, %c0_22] : memref<1x4x8x8xf32, #tpu.memory_space<vmem>>, vector<1x1x8x8xf32>
    %25 = vector.shape_cast %24 : vector<1x1x8x8xf32> to vector<8x8xf32>
    %26 = vector.shape_cast %23 : vector<8x8xf32> to vector<1x1x8x8xf32>
    tpu.vector_store %arg5[%c0_20, %c1, %c0_21, %c0_22], %26 {strides = array<i32>} : memref<1x4x8x8xf32, #tpu.memory_space<vmem>>, vector<1x1x8x8xf32>,
    %27 = vector.extract_strided_slice %6 {offsets = [0, 40], sizes = [8, 8], strides = [1, 1]} : vector<8x96xf32> to vector<8x8xf32>
    %c0_23 = arith.constant 0 : index
    %c1_24 = arith.constant 1 : index
    %c0_25 = arith.constant 0 : index
    %c0_26 = arith.constant 0 : index
    %28 = vector.load %arg6[%c0_23, %c1_24, %c0_25, %c0_26] : memref<1x4x8x8xf32, #tpu.memory_space<vmem>>, vector<1x1x8x8xf32>
    %29 = vector.shape_cast %28 : vector<1x1x8x8xf32> to vector<8x8xf32>
    %30 = vector.shape_cast %27 : vector<8x8xf32> to vector<1x1x8x8xf32>
    tpu.vector_store %arg6[%c0_23, %c1_24, %c0_25, %c0_26], %30 {strides = array<i32>} : memref<1x4x8x8xf32, #tpu.memory_space<vmem>>, vector<1x1x8x8xf32>,
    %31 = vector.extract_strided_slice %6 {offsets = [0, 72], sizes = [8, 8], strides = [1, 1]} : vector<8x96xf32> to vector<8x8xf32>
    %c0_27 = arith.constant 0 : index
    %c1_28 = arith.constant 1 : index
    %c0_29 = arith.constant 0 : index
    %c0_30 = arith.constant 0 : index
    %32 = vector.load %arg7[%c0_27, %c1_28, %c0_29, %c0_30] : memref<1x4x8x8xf32, #tpu.memory_space<vmem>>, vector<1x1x8x8xf32>
    %33 = vector.shape_cast %32 : vector<1x1x8x8xf32> to vector<8x8xf32>
    %34 = vector.shape_cast %31 : vector<8x8xf32> to vector<1x1x8x8xf32>
    tpu.vector_store %arg7[%c0_27, %c1_28, %c0_29, %c0_30], %34 {strides = array<i32>} : memref<1x4x8x8xf32, #tpu.memory_space<vmem>>, vector<1x1x8x8xf32>,
    %35 = vector.extract_strided_slice %6 {offsets = [0, 16], sizes = [8, 8], strides = [1, 1]} : vector<8x96xf32> to vector<8x8xf32>
    %cst_31 = arith.constant 2.500000e-01 : f32
    %36 = vector.broadcast %cst_31 : f32 to vector<8x8xf32>
    %37 = arith.mulf %35, %36 : vector<8x8xf32>
    %c0_32 = arith.constant 0 : index
    %c2 = arith.constant 2 : index
    %c0_33 = arith.constant 0 : index
    %c0_34 = arith.constant 0 : index
    %38 = vector.load %arg5[%c0_32, %c2, %c0_33, %c0_34] : memref<1x4x8x8xf32, #tpu.memory_space<vmem>>, vector<1x1x8x8xf32>
    %39 = vector.shape_cast %38 : vector<1x1x8x8xf32> to vector<8x8xf32>
    %40 = vector.shape_cast %37 : vector<8x8xf32> to vector<1x1x8x8xf32>
    tpu.vector_store %arg5[%c0_32, %c2, %c0_33, %c0_34], %40 {strides = array<i32>} : memref<1x4x8x8xf32, #tpu.memory_space<vmem>>, vector<1x1x8x8xf32>,
    %41 = vector.extract_strided_slice %6 {offsets = [0, 48], sizes = [8, 8], strides = [1, 1]} : vector<8x96xf32> to vector<8x8xf32>
    %c0_35 = arith.constant 0 : index
    %c2_36 = arith.constant 2 : index
    %c0_37 = arith.constant 0 : index
    %c0_38 = arith.constant 0 : index
    %42 = vector.load %arg6[%c0_35, %c2_36, %c0_37, %c0_38] : memref<1x4x8x8xf32, #tpu.memory_space<vmem>>, vector<1x1x8x8xf32>
    %43 = vector.shape_cast %42 : vector<1x1x8x8xf32> to vector<8x8xf32>
    %44 = vector.shape_cast %41 : vector<8x8xf32> to vector<1x1x8x8xf32>
    tpu.vector_store %arg6[%c0_35, %c2_36, %c0_37, %c0_38], %44 {strides = array<i32>} : memref<1x4x8x8xf32, #tpu.memory_space<vmem>>, vector<1x1x8x8xf32>,
    %45 = vector.extract_strided_slice %6 {offsets = [0, 80], sizes = [8, 8], strides = [1, 1]} : vector<8x96xf32> to vector<8x8xf32>
    %c0_39 = arith.constant 0 : index
    %c2_40 = arith.constant 2 : index
    %c0_41 = arith.constant 0 : index
    %c0_42 = arith.constant 0 : index
    %46 = vector.load %arg7[%c0_39, %c2_40, %c0_41, %c0_42] : memref<1x4x8x8xf32, #tpu.memory_space<vmem>>, vector<1x1x8x8xf32>
    %47 = vector.shape_cast %46 : vector<1x1x8x8xf32> to vector<8x8xf32>
    %48 = vector.shape_cast %45 : vector<8x8xf32> to vector<1x1x8x8xf32>
    tpu.vector_store %arg7[%c0_39, %c2_40, %c0_41, %c0_42], %48 {strides = array<i32>} : memref<1x4x8x8xf32, #tpu.memory_space<vmem>>, vector<1x1x8x8xf32>,
    %49 = vector.extract_strided_slice %6 {offsets = [0, 24], sizes = [8, 8], strides = [1, 1]} : vector<8x96xf32> to vector<8x8xf32>
    %cst_43 = arith.constant 2.500000e-01 : f32
    %50 = vector.broadcast %cst_43 : f32 to vector<8x8xf32>
    %51 = arith.mulf %49, %50 : vector<8x8xf32>
    %c0_44 = arith.constant 0 : index
    %c3 = arith.constant 3 : index
    %c0_45 = arith.constant 0 : index
    %c0_46 = arith.constant 0 : index
    %52 = vector.load %arg5[%c0_44, %c3, %c0_45, %c0_46] : memref<1x4x8x8xf32, #tpu.memory_space<vmem>>, vector<1x1x8x8xf32>
    %53 = vector.shape_cast %52 : vector<1x1x8x8xf32> to vector<8x8xf32>
    %54 = vector.shape_cast %51 : vector<8x8xf32> to vector<1x1x8x8xf32>
    tpu.vector_store %arg5[%c0_44, %c3, %c0_45, %c0_46], %54 {strides = array<i32>} : memref<1x4x8x8xf32, #tpu.memory_space<vmem>>, vector<1x1x8x8xf32>,
    %55 = vector.extract_strided_slice %6 {offsets = [0, 56], sizes = [8, 8], strides = [1, 1]} : vector<8x96xf32> to vector<8x8xf32>
    %c0_47 = arith.constant 0 : index
    %c3_48 = arith.constant 3 : index
    %c0_49 = arith.constant 0 : index
    %c0_50 = arith.constant 0 : index
    %56 = vector.load %arg6[%c0_47, %c3_48, %c0_49, %c0_50] : memref<1x4x8x8xf32, #tpu.memory_space<vmem>>, vector<1x1x8x8xf32>
    %57 = vector.shape_cast %56 : vector<1x1x8x8xf32> to vector<8x8xf32>
    %58 = vector.shape_cast %55 : vector<8x8xf32> to vector<1x1x8x8xf32>
    tpu.vector_store %arg6[%c0_47, %c3_48, %c0_49, %c0_50], %58 {strides = array<i32>} : memref<1x4x8x8xf32, #tpu.memory_space<vmem>>, vector<1x1x8x8xf32>,
    %59 = vector.extract_strided_slice %6 {offsets = [0, 88], sizes = [8, 8], strides = [1, 1]} : vector<8x96xf32> to vector<8x8xf32>
    %c0_51 = arith.constant 0 : index
    %c3_52 = arith.constant 3 : index
    %c0_53 = arith.constant 0 : index
    %c0_54 = arith.constant 0 : index
    %60 = vector.load %arg7[%c0_51, %c3_52, %c0_53, %c0_54] : memref<1x4x8x8xf32, #tpu.memory_space<vmem>>, vector<1x1x8x8xf32>
    %61 = vector.shape_cast %60 : vector<1x1x8x8xf32> to vector<8x8xf32>
    %62 = vector.shape_cast %59 : vector<8x8xf32> to vector<1x1x8x8xf32>
    tpu.vector_store %arg7[%c0_51, %c3_52, %c0_53, %c0_54], %62 {strides = array<i32>} : memref<1x4x8x8xf32, #tpu.memory_space<vmem>>, vector<1x1x8x8xf32>,
    return
  }
  func.func @transform_0(%arg0: i32, %arg1: i32) -> (i32, i32, i32) {
    %c0_i32 = arith.constant 0 : i32
    %c0_i32_0 = arith.constant 0 : i32
    return %arg0, %arg1, %c0_i32 : i32, i32, i32
  }
  func.func @transform_1(%arg0: i32, %arg1: i32) -> (i32, i32) {
    %c0_i32 = arith.constant 0 : i32
    %c0_i32_0 = arith.constant 0 : i32
    %c0_i32_1 = arith.constant 0 : i32
    return %c0_i32, %c0_i32_0 : i32, i32
  }
  func.func @transform_2(%arg0: i32, %arg1: i32) -> (i32, i32) {
    %c0_i32 = arith.constant 0 : i32
    %c0_i32_0 = arith.constant 0 : i32
    %c0_i32_1 = arith.constant 0 : i32
    return %c0_i32, %c0_i32_0 : i32, i32
  }
  func.func @transform_3(%arg0: i32, %arg1: i32) -> (i32, i32, i32, i32) {
    %c0_i32 = arith.constant 0 : i32
    %c0_i32_0 = arith.constant 0 : i32
    %c0_i32_1 = arith.constant 0 : i32
    return %arg0, %c0_i32, %arg1, %c0_i32_0 : i32, i32, i32, i32
  }
  func.func @transform_4(%arg0: i32, %arg1: i32) -> (i32, i32, i32, i32) {
    %c0_i32 = arith.constant 0 : i32
    %c0_i32_0 = arith.constant 0 : i32
    %c0_i32_1 = arith.constant 0 : i32
    return %arg0, %c0_i32, %arg1, %c0_i32_0 : i32, i32, i32, i32
  }
  func.func @transform_5(%arg0: i32, %arg1: i32) -> (i32, i32, i32, i32) {
    %c0_i32 = arith.constant 0 : i32
    %c0_i32_0 = arith.constant 0 : i32
    %c0_i32_1 = arith.constant 0 : i32
    return %arg0, %c0_i32, %arg1, %c0_i32_0 : i32, i32, i32, i32
  }
}

</mosaic_0001>

<llo_original>
// kernel: tpu_custom_call.1
$region0: #{tpu_custom_call.1}
  #allocation0 [shape = 'u32[]', space=smem, size = 0x4, offset = 0x4, fixed_abs, tag = 'smem constant byte address 0x4 - core index']
  #allocation1 [shape = 'u32[144,128]{1,0:T(1,128)}', space=vmem, size = 0x12000, scoped, tag = 'internal scratch']
  %s0 = inlined_call_operand.hbm [shape: f32[2,16,32], index: 0, kind: input, shape index: {}]
  %s1 = inlined_call_operand.hbm [shape: f32[32,96], index: 1, kind: input, shape index: {}]
  %s2 = inlined_call_operand.vmem [shape: f32[1,96], index: 2, kind: input, shape index: {}]
  %s3 = inlined_call_operand.vmem [shape: f32[2,4,16,8], index: 3, kind: output, shape index: {0}]
  %s4 = inlined_call_operand.vmem [shape: f32[2,4,16,8], index: 4, kind: output, shape index: {1}]
  %s5 = inlined_call_operand.vmem [shape: f32[2,4,16,8], index: 5, kind: output, shape index: {2}]
  %6 = xla_tuple %s3, %s4, %s5
  %s7 = sld [smem:[#allocation0]]
  $region171: #{tpu_custom_call.1} parent=0
    _
  %s9 = ssub.s32 1, %s7
  %s10 = scalar_select 0, %s9, %s7
  $region1: #{tpu_custom_call.1} parent=0
    #allocation2 [shape = 'u8[8192]{0}', space=vmem, size = 0x2000, scoped, tag = 'input window, operand 0']
    #allocation3 [shape = 's32[2]{0}', space=sflag, size = 0x8, scoped, tag = 'scoped memory for tpu_custom_call.1']
    #allocation4 [shape = 'u8[16384]{0}', space=vmem, size = 0x4000, scoped, tag = 'input window, operand 1, single buffered']
    #allocation5 [shape = 's32[1]{0}', space=sflag, size = 0x4, scoped, tag = 'scoped memory for tpu_custom_call.1']
    #allocation6 [shape = 'u8[32768]{0}', space=vmem, size = 0x8000, scoped, tag = 'output window, operand 0']
    #allocation7 [shape = 'u8[32768]{0}', space=vmem, size = 0x8000, scoped, tag = 'output window, operand 1']
    #allocation8 [shape = 'u8[32768]{0}', space=vmem, size = 0x8000, scoped, tag = 'output window, operand 2']
    %11 = vsyncpa [#allocation3], 0
    %s12 = scalar_lea.sflag [#allocation3], 1
    %13 = vsyncpa %s12, 0
    %14 = vsyncpa [#allocation5], 0
    loop: start=0, step=1, limit=6
    $region2: #{tpu_custom_call.1} parent=1 // loop_pre_header
      _
    $region3: #{tpu_custom_call.1} parent=1 // loop_header
      %s16 = sphi 0, %s20
      %p17 = scmp.ge.s32.totalorder %s16, 6
      %s23 = sphi 0, %s35
      %s24 = sphi 0, %s31
      %s25 = sphi 0, %s23
      %s26 = sphi 0, %s24
      %s27 = sphi 0, %s25
      %s28 = sphi 0, %s26
      %s40 = sphi 0, %s42
      %s43 = sphi 0, %s40
      %s44 = sphi 0, %s43
      %s60 = sphi 0, %s44
      %s64 = sphi 0, %s64
      %s66 = sphi 0, %s64
      %s67 = sphi 0, %s66
      %s81 = sphi 0, %s67
      %s85 = sphi 0, %s85
      %s87 = sphi 0, %s85
      %s88 = sphi 0, %s87
      %s102 = sphi 0, %s88
      %s110 = sphi 0, %s112
      %s113 = sphi 0, %s110
      %s114 = sphi 0, %s113
      %s130 = sphi 0, %s114
      %s138 = sphi 0, %s140
      %s141 = sphi 0, %s138
      %s142 = sphi 0, %s141
      %s158 = sphi 0, %s142
      %s166 = sphi 0, %s168
      %s169 = sphi 0, %s166
      %s170 = sphi 0, %s169
      %s186 = sphi 0, %s170
    $region4: #{tpu_custom_call.1} parent=1 // loop_header_branch
      %19 = sbr.rel (%p17) target = $region8
    $region5: #{tpu_custom_call.1} parent=1 // loop_body
      %s21 = ssub.s32 %s16, 1
      %s22 = ssub.s32 %s16, 2
      %s29 = sadd.s32 1, %s24
      %p30 = scmp.ge.s32.totalorder %s29, 2
      %s31 = scalar_select %p30, 0, %s29
      %s32 = sadd.s32 1, %s23
      %s33 = scalar_select %p30, %s32, %s23
      %p34 = scmp.ge.s32.totalorder %s33, 2
      %s35 = scalar_select %p34, 0, %s33
      %s36 = ssub.s32 %s23, %s35
      %s37 = ssub.s32 %s24, %s31
      %s38 = sor.u32 %s36, %s37
      %p39 = scmp.eq.s32.totalorder %s38, 0
      %s41 = sadd.s32 %s40, 1
      %s42 = scalar_select %p39, %s40, %s41
      %p45 = pneg %p39
      %p46 = scmp.eq.s32.totalorder %s16, 3
      %p47 = por %p45, %p46
      %p48 = scmp.ne.s32.totalorder %s40, %s43
      %p49 = scmp.eq.s32.totalorder %s16, 0
      %p50 = por %p48, %p49
      %p51 = scmp.ne.s32.totalorder %s40, %s43
      %p52 = scmp.eq.s32.totalorder %s21, 3
      %p53 = por %p51, %p52
      %p54 = scmp.ne.s32.totalorder %s43, %s44
      %p55 = scmp.eq.s32.totalorder %s21, 0
      %p56 = por %p54, %p55
      %p57 = scmp.ne.s32.totalorder %s43, %s44
      %p58 = scmp.eq.s32.totalorder %s22, 3
      %p59 = por %p57, %p58
      %p61 = scmp.ne.s32.totalorder %s44, %s60
      %p62 = scmp.eq.s32.totalorder %s22, 0
      %p63 = por %p61, %p62
      %s65 = sadd.s32 %s64, 1
      %p68 = scmp.eq.s32.totalorder %s16, 3
      %p69 = scmp.ne.s32.totalorder %s64, %s66
      %p70 = scmp.eq.s32.totalorder %s16, 0
      %p71 = por %p69, %p70
      %p72 = scmp.ne.s32.totalorder %s64, %s66
      %p73 = scmp.eq.s32.totalorder %s21, 3
      %p74 = por %p72, %p73
      %p75 = scmp.ne.s32.totalorder %s66, %s67
      %p76 = scmp.eq.s32.totalorder %s21, 0
      %p77 = por %p75, %p76
      %p78 = scmp.ne.s32.totalorder %s66, %s67
      %p79 = scmp.eq.s32.totalorder %s22, 3
      %p80 = por %p78, %p79
      %p82 = scmp.ne.s32.totalorder %s67, %s81
      %p83 = scmp.eq.s32.totalorder %s22, 0
      %p84 = por %p82, %p83
      %s86 = sadd.s32 %s85, 1
      %p89 = scmp.eq.s32.totalorder %s16, 3
      %p90 = scmp.ne.s32.totalorder %s85, %s87
      %p91 = scmp.eq.s32.totalorder %s16, 0
      %p92 = por %p90, %p91
      %p93 = scmp.ne.s32.totalorder %s85, %s87
      %p94 = scmp.eq.s32.totalorder %s21, 3
      %p95 = por %p93, %p94
      %p96 = scmp.ne.s32.totalorder %s87, %s88
      %p97 = scmp.eq.s32.totalorder %s21, 0
      %p98 = por %p96, %p97
      %p99 = scmp.ne.s32.totalorder %s87, %s88
      %p100 = scmp.eq.s32.totalorder %s22, 3
      %p101 = por %p99, %p100
      %p103 = scmp.ne.s32.totalorder %s88, %s102
      %p104 = scmp.eq.s32.totalorder %s22, 0
      %p105 = por %p103, %p104
      %s106 = ssub.s32 %s23, %s35
      %s107 = ssub.s32 %s24, %s31
      %s108 = sor.u32 %s106, %s107
      %p109 = scmp.eq.s32.totalorder %s108, 0
      %s111 = sadd.s32 %s110, 1
      %s112 = scalar_select %p109, %s110, %s111
      %p115 = pneg %p109
      %p116 = scmp.eq.s32.totalorder %s16, 3
      %p117 = por %p115, %p116
      %p118 = scmp.ne.s32.totalorder %s110, %s113
      %p119 = scmp.eq.s32.totalorder %s16, 0
      %p120 = por %p118, %p119
      %p121 = scmp.ne.s32.totalorder %s110, %s113
      %p122 = scmp.eq.s32.totalorder %s21, 3
      %p123 = por %p121, %p122
      %p124 = scmp.ne.s32.totalorder %s113, %s114
      %p125 = scmp.eq.s32.totalorder %s21, 0
      %p126 = por %p124, %p125
      %p127 = scmp.ne.s32.totalorder %s113, %s114
      %p128 = scmp.eq.s32.totalorder %s22, 3
      %p129 = por %p127, %p128
      %p131 = scmp.ne.s32.totalorder %s114, %s130
      %p132 = scmp.eq.s32.totalorder %s22, 0
      %p133 = por %p131, %p132
      %s134 = ssub.s32 %s23, %s35
      %s135 = ssub.s32 %s24, %s31
      %s136 = sor.u32 %s134, %s135
      %p137 = scmp.eq.s32.totalorder %s136, 0
      %s139 = sadd.s32 %s138, 1
      %s140 = scalar_select %p137, %s138, %s139
      %p143 = pneg %p137
      %p144 = scmp.eq.s32.totalorder %s16, 3
      %p145 = por %p143, %p144
      %p146 = scmp.ne.s32.totalorder %s138, %s141
      %p147 = scmp.eq.s32.totalorder %s16, 0
      %p148 = por %p146, %p147
      %p149 = scmp.ne.s32.totalorder %s138, %s141
      %p150 = scmp.eq.s32.totalorder %s21, 3
      %p151 = por %p149, %p150
      %p152 = scmp.ne.s32.totalorder %s141, %s142
      %p153 = scmp.eq.s32.totalorder %s21, 0
      %p154 = por %p152, %p153
      %p155 = scmp.ne.s32.totalorder %s141, %s142
      %p156 = scmp.eq.s32.totalorder %s22, 3
      %p157 = por %p155, %p156
      %p159 = scmp.ne.s32.totalorder %s142, %s158
      %p160 = scmp.eq.s32.totalorder %s22, 0
      %p161 = por %p159, %p160
      %s162 = ssub.s32 %s23, %s35
      %s163 = ssub.s32 %s24, %s31
      %s164 = sor.u32 %s162, %s163
      %p165 = scmp.eq.s32.totalorder %s164, 0
      %s167 = sadd.s32 %s166, 1
      %s168 = scalar_select %p165, %s166, %s167
      %p171 = pneg %p165
      %p172 = scmp.eq.s32.totalorder %s16, 3
      %p173 = por %p171, %p172
      %p174 = scmp.ne.s32.totalorder %s166, %s169
      %p175 = scmp.eq.s32.totalorder %s16, 0
      %p176 = por %p174, %p175
      %p177 = scmp.ne.s32.totalorder %s166, %s169
      %p178 = scmp.eq.s32.totalorder %s21, 3
      %p179 = por %p177, %p178
      %p180 = scmp.ne.s32.totalorder %s169, %s170
      %p181 = scmp.eq.s32.totalorder %s21, 0
      %p182 = por %p180, %p181
      %p183 = scmp.ne.s32.totalorder %s169, %s170
      %p184 = scmp.eq.s32.totalorder %s22, 3
      %p185 = por %p183, %p184
      %p187 = scmp.ne.s32.totalorder %s170, %s186
      %p188 = scmp.eq.s32.totalorder %s22, 0
      %p189 = por %p187, %p188
      %p190 = scmp.le.s32.totalorder 1, %s16
      %p191 = scmp.lt.s32.totalorder %s16, 5
      %p192 = pnand %p190, %p191
      %p193 = pneg %p192
      // Predicated region
      $region9: #{tpu_custom_call.1} parent=5 // pred_check
        _
      $region10: #{tpu_custom_call.1} parent=5 // pred_check_branch
        %195 = sbr.rel (%p192) target = $region12
      $region11: #{tpu_custom_call.1} parent=5 // pred_region
        %s196 = ssub.s32 %s16, 1
        // Predicated region
        $region13: #{tpu_custom_call.1} parent=11 // pred_check
          %p197 = pneg %p77
        $region14: #{tpu_custom_call.1} parent=11 // pred_check_branch
          %199 = sbr.rel (%p197) target = $region16
        $region15: #{tpu_custom_call.1} parent=11 // pred_region
          %s201 = ssub.s32 512, 512
          %202 = vsyncadd [#allocation5], %s201
          %s203 = sshll.u32 [#allocation4], 4
          %s204 = int_to_ptr.vmem [resolvable:$true] %s203
          %209 = dma.hbm_to_vmem [thread:$0]  %s1, 512, %s204, [#allocation5], 128, 128, 8
        $region16: #{tpu_custom_call.1} parent=11 // pred_fallthru
          _
        // Predicated region
        $region17: #{tpu_custom_call.1} parent=11 // pred_check
          %p210 = pneg %p98
        $region18: #{tpu_custom_call.1} parent=11 // pred_check_branch
          %212 = sbr.rel (%p210) target = $region20
        $region19: #{tpu_custom_call.1} parent=11 // pred_region
          _
        $region20: #{tpu_custom_call.1} parent=11 // pred_fallthru
          _
      $region12: #{tpu_custom_call.1} parent=5 // pred_fallthru
        _
      %p213 = scmp.lt.s32.totalorder %s16, 4
      // Predicated region
      $region21: #{tpu_custom_call.1} parent=5 // pred_check
        %p214 = pneg %p213
      $region22: #{tpu_custom_call.1} parent=5 // pred_check_branch
        %216 = sbr.rel (%p214) target = $region24
      $region23: #{tpu_custom_call.1} parent=5 // pred_region
        // Predicated region
        $region25: #{tpu_custom_call.1} parent=23 // pred_check
          %p217 = pneg %p50
        $region26: #{tpu_custom_call.1} parent=23 // pred_check_branch
          %219 = sbr.rel (%p217) target = $region28
        $region27: #{tpu_custom_call.1} parent=23 // pred_region
          %s220 = sand.u32 %s40, 1
          %s221 = scalar_lea.sflag [#allocation3], %s220
          %s222 = sand.u32 %s40, 1
          %s223 = smul.addr %s222, 8
          %s224 = scalar_lea.vmem [#allocation2], %s223
          %s226 = ssub.s32 128, 128
          %227 = vsyncadd %s221, %s226
          %s228 = smul.addr %s23, 2
          %s229 = sadd.s32 %s24, %s228
          %s230 = smul.addr %s229, 128
          %s231 = scalar_lea.hbm %s0, %s230
          %s233 = sshll.u32 %s224, 4
          %s234 = int_to_ptr.vmem [resolvable:$true] %s233
          %236 = dma.hbm_to_vmem [thread:$0]  %s231, 128, %s234, %s221
        $region28: #{tpu_custom_call.1} parent=23 // pred_fallthru
          _
      $region24: #{tpu_custom_call.1} parent=5 // pred_fallthru
        _
      %p237 = scmp.le.s32.totalorder 1, %s16
      %p238 = scmp.lt.s32.totalorder %s16, 5
      %p239 = pnand %p237, %p238
      %p240 = pneg %p239
      // Predicated region
      $region29: #{tpu_custom_call.1} parent=5 // pred_check
        _
      $region30: #{tpu_custom_call.1} parent=5 // pred_check_branch
        %242 = sbr.rel (%p239) target = $region32
      $region31: #{tpu_custom_call.1} parent=5 // pred_region
        %s243 = ssub.s32 %s16, 1
        %s244 = sand.u32 %s43, 1
        %s245 = scalar_lea.sflag [#allocation3], %s244
        %s246 = sand.u32 %s43, 1
        %s247 = smul.addr %s246, 8
        %s248 = scalar_lea.vmem [#allocation2], %s247
        // Predicated region
        $region33: #{tpu_custom_call.1} parent=31 // pred_check
          %p249 = pneg %p56
        $region34: #{tpu_custom_call.1} parent=31 // pred_check_branch
          %251 = sbr.rel (%p249) target = $region36
        $region35: #{tpu_custom_call.1} parent=31 // pred_region
          %252 = dma.done %s245, 128
        $region36: #{tpu_custom_call.1} parent=31 // pred_fallthru
          _
        // Predicated region
        $region37: #{tpu_custom_call.1} parent=31 // pred_check
          %p253 = pneg %p77
        $region38: #{tpu_custom_call.1} parent=31 // pred_check_branch
          %255 = sbr.rel (%p253) target = $region40
        $region39: #{tpu_custom_call.1} parent=31 // pred_region
          %256 = dma.done [#allocation5], 512
        $region40: #{tpu_custom_call.1} parent=31 // pred_fallthru
          _
        %s257 = sand.u32 %s43, 1
        %s258 = scalar_lea.sflag [#allocation3], %s257
        %s259 = sand.u32 %s43, 1
        %s260 = smul.addr %s259, 8
        %s261 = scalar_lea.vmem [#allocation2], %s260
        %p262 = pneg %p56
        %p263 = pneg %p53
        %p264 = pneg %p77
        %p265 = pneg %p74
        %p266 = pneg %p98
        %p267 = pneg %p95
        %p268 = pneg %p126
        %p269 = pneg %p123
        %s270 = sand.u32 %s113, 1
        %s271 = sand.u32 %s113, 1
        %s272 = smul.addr %s271, 32
        %s273 = scalar_lea.vmem [#allocation6], %s272
        %p274 = pneg %p154
        %p275 = pneg %p151
        %s276 = sand.u32 %s141, 1
        %s277 = sand.u32 %s141, 1
        %s278 = smul.addr %s277, 32
        %s279 = scalar_lea.vmem [#allocation7], %s278
        %p280 = pneg %p182
        %p281 = pneg %p179
        %s282 = sand.u32 %s169, 1
        %s283 = sand.u32 %s169, 1
        %s284 = smul.addr %s283, 32
        %s285 = scalar_lea.vmem [#allocation8], %s284
        %v286 = vld [vmem:[%s248] sm:$0xff]
        %v287 = vld [vmem:[#allocation4] sm:$0xff]
        %v288 = vld [vmem:[#allocation4 + $0x8] sm:$0xff]
        %v289 = vld [vmem:[#allocation4 + $0x10] sm:$0xff]
        %v290 = vld [vmem:[#allocation4 + $0x18] sm:$0xff]
        %v291 = vld [vmem:[%s2] sm:$0x1]
        %v293 = vlaneseq
        %v294 = vshrl.u32 %v293, 7
        %v295 = vsub.s32 0, %v294
        %v296 = vrot.slane %v291, %v295
        %vm298 = vcmask 261120
        %v300 = vsel %vm298, %v286, 0
        %302 = vmatprep.subr.mxu0 0.0
        %303 = vmatpush1.msra.mxu0 0.0
        %304 = vmatprep.subr.mxu0 0.0
        %305 = vmatpush1.msra.mxu0 0.0
        %306 = vmatprep.subr.mxu0 0.0
        %307 = vmatpush1.msra.mxu0 0.0
        %308 = vmatprep.subr.mxu0 0.0
        %309 = vmatpush1.msra.mxu0 0.0
        %310 = vmatprep.subr.mxu0 0.0
        %311 = vmatpush1.msra.mxu0 0.0
        %312 = vmatprep.subr.mxu0 0.0
        %313 = vmatpush1.msra.mxu0 0.0
        %314 = vmatprep.subr.mxu0 0.0
        %315 = vmatpush1.msra.mxu0 0.0
        %316 = vmatprep.subr.mxu0 0.0
        %317 = vmatpush1.msra.mxu0 0.0
        %318 = vmatprep.subr.mxu0 0.0
        %319 = vmatpush1.msra.mxu0 0.0
        %320 = vmatprep.subr.mxu0 0.0
        %321 = vmatpush1.msra.mxu0 0.0
        %322 = vmatprep.subr.mxu0 0.0
        %323 = vmatpush1.msra.mxu0 0.0
        %324 = vmatprep.subr.mxu0 0.0
        %325 = vmatpush1.msra.mxu0 0.0
        %326 = vmatprep.subr.mxu0 0.0
        %327 = vmatpush1.msra.mxu0 %v290
        %328 = vmatprep.subr.mxu0 0.0
        %329 = vmatpush1.msra.mxu0 %v289
        %330 = vmatprep.subr.mxu0 0.0
        %331 = vmatpush1.msra.mxu0 %v288
        %332 = vmatprep.subr.mxu0 0.0
        %333 = vmatpush1.msra.mxu0 %v287
        %334 = vmatprep.subr.mxu0 0.0
        %335 = vmatpush2.msra.mxu0 0.0
        %336 = vmatprep.subr.mxu0 0.0
        %337 = vmatpush2.msra.mxu0 0.0
        %338 = vmatprep.subr.mxu0 0.0
        %339 = vmatpush2.msra.mxu0 0.0
        %340 = vmatprep.subr.mxu0 0.0
        %341 = vmatpush2.msra.mxu0 0.0
        %342 = vmatprep.subr.mxu0 0.0
        %343 = vmatpush2.msra.mxu0 0.0
        %344 = vmatprep.subr.mxu0 0.0
        %345 = vmatpush2.msra.mxu0 0.0
        %346 = vmatprep.subr.mxu0 0.0
        %347 = vmatpush2.msra.mxu0 0.0
        %348 = vmatprep.subr.mxu0 0.0
        %349 = vmatpush2.msra.mxu0 0.0
        %350 = vmatprep.subr.mxu0 0.0
        %351 = vmatpush2.msra.mxu0 0.0
        %352 = vmatprep.subr.mxu0 0.0
        %353 = vmatpush2.msra.mxu0 0.0
        %354 = vmatprep.subr.mxu0 0.0
        %355 = vmatpush2.msra.mxu0 0.0
        %356 = vmatprep.subr.mxu0 0.0
        %357 = vmatpush2.msra.mxu0 0.0
        %358 = vmatprep.subr.mxu0 0.0
        %359 = vmatpush2.msra.mxu0 0.0
        %360 = vmatprep.subr.mxu0 0.0
        %361 = vmatpush2.msra.mxu0 0.0
        %362 = vmatprep.subr.mxu0 0.0
        %363 = vmatpush2.msra.mxu0 0.0
        %364 = vmatprep.subr.mxu0 0.0
        %365 = vmatpush2.msra.mxu0 0.0
        %366 = vmatprep.mubr.f32.mxu0 0.0
        %367 = vmatmul.mubr.f32.gmra.mxu0 %v300
        %v368 = vpop.f32.mrf.mxu0
        %v369 = vadd.f32 %v296, %v368
        %v370 = vpop.f32.mrf.mxu0
        %371 = vdwg.mxu0
        %v372 = vmul.f32 %v369, 0.25
        %vm373 = vcmask 64512
        %374 = vst.msk [vmem:[%s273] sm:$0xff] %vm373, %v372
        %376 = vrot.lane.b32.xlu0 %v369, 96
        %v377 = vpop.permute.xlu0 %376
        %379 = vst.msk [vmem:[%s279] sm:$0xff] %vm373, %v377
        %380 = vrot.lane.b32.xlu0 %v369, 64
        %v381 = vpop.permute.xlu0 %380
        %383 = vst.msk [vmem:[%s285] sm:$0xff] %vm373, %v381
        %385 = vrot.lane.b32.xlu0 %v372, 120
        %v386 = vpop.permute.xlu0 %385
        %s388 = scalar_lea.vmem %s273, 8 [#allocation6]
        %389 = vst.msk [vmem:[%s388] sm:$0xff] %vm373, %v386
        %390 = vrot.lane.b32.xlu0 %v369, 88
        %v391 = vpop.permute.xlu0 %390
        %s393 = scalar_lea.vmem %s279, 8 [#allocation7]
        %394 = vst.msk [vmem:[%s393] sm:$0xff] %vm373, %v391
        %395 = vrot.lane.b32.xlu0 %v369, 56
        %v396 = vpop.permute.xlu0 %395
        %s398 = scalar_lea.vmem %s285, 8 [#allocation8]
        %399 = vst.msk [vmem:[%s398] sm:$0xff] %vm373, %v396
        %400 = vrot.lane.b32.xlu0 %v372, 112
        %v401 = vpop.permute.xlu0 %400
        %s403 = scalar_lea.vmem %s273, 16 [#allocation6]
        %404 = vst.msk [vmem:[%s403] sm:$0xff] %vm373, %v401
        %405 = vrot.lane.b32.xlu0 %v369, 80
        %v406 = vpop.permute.xlu0 %405
        %s408 = scalar_lea.vmem %s279, 16 [#allocation7]
        %409 = vst.msk [vmem:[%s408] sm:$0xff] %vm373, %v406
        %410 = vrot.lane.b32.xlu0 %v369, 48
        %v411 = vpop.permute.xlu0 %410
        %s413 = scalar_lea.vmem %s285, 16 [#allocation8]
        %414 = vst.msk [vmem:[%s413] sm:$0xff] %vm373, %v411
        %415 = vrot.lane.b32.xlu0 %v372, 104
        %v416 = vpop.permute.xlu0 %415
        %s418 = scalar_lea.vmem %s273, 24 [#allocation6]
        %419 = vst.msk [vmem:[%s418] sm:$0xff] %vm373, %v416
        %420 = vrot.lane.b32.xlu0 %v369, 72
        %v421 = vpop.permute.xlu0 %420
        %s423 = scalar_lea.vmem %s279, 24 [#allocation7]
        %424 = vst.msk [vmem:[%s423] sm:$0xff] %vm373, %v421
        %425 = vrot.lane.b32.xlu0 %v369, 40
        %v426 = vpop.permute.xlu0 %425
        %s428 = scalar_lea.vmem %s285, 24 [#allocation8]
        %429 = vst.msk [vmem:[%s428] sm:$0xff] %vm373, %v426
        %s430 = sand.u32 %s113, 1
        %s431 = sand.u32 %s113, 1
        %s432 = smul.addr %s431, 32
        %s433 = scalar_lea.vmem [#allocation6], %s432
        %s434 = sand.u32 %s141, 1
        %s435 = sand.u32 %s141, 1
        %s436 = smul.addr %s435, 32
        %s437 = scalar_lea.vmem [#allocation7], %s436
        %s438 = sand.u32 %s169, 1
        %s439 = sand.u32 %s169, 1
        %s440 = smul.addr %s439, 32
        %s441 = scalar_lea.vmem [#allocation8], %s440
        // Predicated region
        $region41: #{tpu_custom_call.1} parent=31 // pred_check
          %p442 = pneg %p123
        $region42: #{tpu_custom_call.1} parent=31 // pred_check_branch
          %444 = sbr.rel (%p442) target = $region44
        $region43: #{tpu_custom_call.1} parent=31 // pred_region
          %s445 = smul.addr %s25, 8
          %s446 = sadd.s32 %s26, %s445
          %s447 = smul.addr %s446, 8
          %s448 = scalar_lea.vmem %s3, %s447
          // Predicated region
          $region45: #{tpu_custom_call.1} parent=43 // pred_check
            _
          $region46: #{tpu_custom_call.1} parent=43 // pred_check_branch
            %450 = sbr.rel (0) target = $region48
          $region47: #{tpu_custom_call.1} parent=43 // pred_region
            // Predicated region
            $region49: #{tpu_custom_call.1} parent=47 // pred_check
              _
            $region50: #{tpu_custom_call.1} parent=47 // pred_check_branch
              %452 = sbr.rel (0) target = $region52
            $region51: #{tpu_custom_call.1} parent=47 // pred_region
              // Predicated region
              $region64: #{tpu_custom_call.1} parent=51 // pred_check
                _
              $region65: #{tpu_custom_call.1} parent=51 // pred_check_branch
                %474 = sbr.rel (0) target = $region67
              $region66: #{tpu_custom_call.1} parent=51 // pred_region
                loop: start=0, step=1, limit=1
                $region68: #{tpu_custom_call.1} parent=66 // loop_pre_header
                  _
                $region69: #{tpu_custom_call.1} parent=66 // loop_header
                  %s476 = sphi 0, %s480
                  %p477 = scmp.ge.s32.totalorder %s476, 1
                  %s481 = sphi %s433, %s433
                  %s482 = sphi %s448, %s448
                $region70: #{tpu_custom_call.1} parent=66 // loop_header_branch
                  %479 = sbr.rel (%p477) target = $region74
                $region71: #{tpu_custom_call.1} parent=66 // loop_body
                  %v483 = vld [vmem:[%s481] sm:$0xff]
                  %484 = vst [vmem:[%s482] sm:$0xff] %v483
                  %v485 = vld [vmem:[%s481 + $0x8] sm:$0xff]
                  %486 = vst [vmem:[%s482 + $0x10] sm:$0xff] %v485
                  %v487 = vld [vmem:[%s481 + $0x10] sm:$0xff]
                  %488 = vst [vmem:[%s482 + $0x20] sm:$0xff] %v487
                  %v489 = vld [vmem:[%s481 + $0x18] sm:$0xff]
                  %490 = vst [vmem:[%s482 + $0x30] sm:$0xff] %v489
                $region72: #{tpu_custom_call.1} parent=66 // loop_footer
                  %s480 = sadd.s32 1, %s476
                $region73: #{tpu_custom_call.1} parent=66 // loop_footer_branch
                  %475 = sbr.rel target = $region69
                $region74: #{tpu_custom_call.1} parent=66 // loop_exit
                  _
              $region67: #{tpu_custom_call.1} parent=51 // pred_fallthru
                _
              // Predicated region
              $region75: #{tpu_custom_call.1} parent=51 // pred_check
                _
              $region76: #{tpu_custom_call.1} parent=51 // pred_check_branch
                %492 = sbr.rel target = $region78
              $region77: #{tpu_custom_call.1} parent=51 // pred_region
                _
              $region78: #{tpu_custom_call.1} parent=51 // pred_fallthru
                _
            $region52: #{tpu_custom_call.1} parent=47 // pred_fallthru
              _
            // Predicated region
            $region53: #{tpu_custom_call.1} parent=47 // pred_check
              _
            $region54: #{tpu_custom_call.1} parent=47 // pred_check_branch
              %454 = sbr.rel target = $region56
            $region55: #{tpu_custom_call.1} parent=47 // pred_region
              %s456 = ssub.s32 256, 1
              loop: start=0, step=1, limit=1
              $region57: #{tpu_custom_call.1} parent=55 // loop_pre_header
                _
              $region58: #{tpu_custom_call.1} parent=55 // loop_header
                %s458 = sphi 0, %s462
                %p459 = scmp.ge.s32.totalorder %s458, 1
                %s463 = sphi %s433, %s433
                %s464 = sphi %s448, %s448
              $region59: #{tpu_custom_call.1} parent=55 // loop_header_branch
                %461 = sbr.rel (%p459) target = $region63
              $region60: #{tpu_custom_call.1} parent=55 // loop_body
                %v465 = vld [vmem:[%s463] sm:%s456]
                %466 = vst [vmem:[%s464] sm:%s456] %v465
                %v467 = vld [vmem:[%s463 + $0x8] sm:%s456]
                %468 = vst [vmem:[%s464 + $0x10] sm:%s456] %v467
                %v469 = vld [vmem:[%s463 + $0x10] sm:%s456]
                %470 = vst [vmem:[%s464 + $0x20] sm:%s456] %v469
                %v471 = vld [vmem:[%s463 + $0x18] sm:%s456]
                %472 = vst [vmem:[%s464 + $0x30] sm:%s456] %v471
              $region61: #{tpu_custom_call.1} parent=55 // loop_footer
                %s462 = sadd.s32 1, %s458
              $region62: #{tpu_custom_call.1} parent=55 // loop_footer_branch
                %457 = sbr.rel target = $region58
              $region63: #{tpu_custom_call.1} parent=55 // loop_exit
                _
            $region56: #{tpu_custom_call.1} parent=47 // pred_fallthru
              _
          $region48: #{tpu_custom_call.1} parent=43 // pred_fallthru
            _
          %493 = vnop
        $region44: #{tpu_custom_call.1} parent=31 // pred_fallthru
          _
        // Predicated region
        $region79: #{tpu_custom_call.1} parent=31 // pred_check
          %p494 = pneg %p151
        $region80: #{tpu_custom_call.1} parent=31 // pred_check_branch
          %496 = sbr.rel (%p494) target = $region82
        $region81: #{tpu_custom_call.1} parent=31 // pred_region
          %s497 = smul.addr %s25, 8
          %s498 = sadd.s32 %s26, %s497
          %s499 = smul.addr %s498, 8
          %s500 = scalar_lea.vmem %s4, %s499
          // Predicated region
          $region83: #{tpu_custom_call.1} parent=81 // pred_check
            _
          $region84: #{tpu_custom_call.1} parent=81 // pred_check_branch
            %502 = sbr.rel (0) target = $region86
          $region85: #{tpu_custom_call.1} parent=81 // pred_region
            // Predicated region
            $region87: #{tpu_custom_call.1} parent=85 // pred_check
              _
            $region88: #{tpu_custom_call.1} parent=85 // pred_check_branch
              %504 = sbr.rel (0) target = $region90
            $region89: #{tpu_custom_call.1} parent=85 // pred_region
              // Predicated region
              $region102: #{tpu_custom_call.1} parent=89 // pred_check
                _
              $region103: #{tpu_custom_call.1} parent=89 // pred_check_branch
                %526 = sbr.rel (0) target = $region105
              $region104: #{tpu_custom_call.1} parent=89 // pred_region
                loop: start=0, step=1, limit=1
                $region106: #{tpu_custom_call.1} parent=104 // loop_pre_header
                  _
                $region107: #{tpu_custom_call.1} parent=104 // loop_header
                  %s528 = sphi 0, %s532
                  %p529 = scmp.ge.s32.totalorder %s528, 1
                  %s533 = sphi %s437, %s437
                  %s534 = sphi %s500, %s500
                $region108: #{tpu_custom_call.1} parent=104 // loop_header_branch
                  %531 = sbr.rel (%p529) target = $region112
                $region109: #{tpu_custom_call.1} parent=104 // loop_body
                  %v535 = vld [vmem:[%s533] sm:$0xff]
                  %536 = vst [vmem:[%s534] sm:$0xff] %v535
                  %v537 = vld [vmem:[%s533 + $0x8] sm:$0xff]
                  %538 = vst [vmem:[%s534 + $0x10] sm:$0xff] %v537
                  %v539 = vld [vmem:[%s533 + $0x10] sm:$0xff]
                  %540 = vst [vmem:[%s534 + $0x20] sm:$0xff] %v539
                  %v541 = vld [vmem:[%s533 + $0x18] sm:$0xff]
                  %542 = vst [vmem:[%s534 + $0x30] sm:$0xff] %v541
                $region110: #{tpu_custom_call.1} parent=104 // loop_footer
                  %s532 = sadd.s32 1, %s528
                $region111: #{tpu_custom_call.1} parent=104 // loop_footer_branch
                  %527 = sbr.rel target = $region107
                $region112: #{tpu_custom_call.1} parent=104 // loop_exit
                  _
              $region105: #{tpu_custom_call.1} parent=89 // pred_fallthru
                _
              // Predicated region
              $region113: #{tpu_custom_call.1} parent=89 // pred_check
                _
              $region114: #{tpu_custom_call.1} parent=89 // pred_check_branch
                %544 = sbr.rel target = $region116
              $region115: #{tpu_custom_call.1} parent=89 // pred_region
                _
              $region116: #{tpu_custom_call.1} parent=89 // pred_fallthru
                _
            $region90: #{tpu_custom_call.1} parent=85 // pred_fallthru
              _
            // Predicated region
            $region91: #{tpu_custom_call.1} parent=85 // pred_check
              _
            $region92: #{tpu_custom_call.1} parent=85 // pred_check_branch
              %506 = sbr.rel target = $region94
            $region93: #{tpu_custom_call.1} parent=85 // pred_region
              %s508 = ssub.s32 256, 1
              loop: start=0, step=1, limit=1
              $region95: #{tpu_custom_call.1} parent=93 // loop_pre_header
                _
              $region96: #{tpu_custom_call.1} parent=93 // loop_header
                %s510 = sphi 0, %s514
                %p511 = scmp.ge.s32.totalorder %s510, 1
                %s515 = sphi %s437, %s437
                %s516 = sphi %s500, %s500
              $region97: #{tpu_custom_call.1} parent=93 // loop_header_branch
                %513 = sbr.rel (%p511) target = $region101
              $region98: #{tpu_custom_call.1} parent=93 // loop_body
                %v517 = vld [vmem:[%s515] sm:%s508]
                %518 = vst [vmem:[%s516] sm:%s508] %v517
                %v519 = vld [vmem:[%s515 + $0x8] sm:%s508]
                %520 = vst [vmem:[%s516 + $0x10] sm:%s508] %v519
                %v521 = vld [vmem:[%s515 + $0x10] sm:%s508]
                %522 = vst [vmem:[%s516 + $0x20] sm:%s508] %v521
                %v523 = vld [vmem:[%s515 + $0x18] sm:%s508]
                %524 = vst [vmem:[%s516 + $0x30] sm:%s508] %v523
              $region99: #{tpu_custom_call.1} parent=93 // loop_footer
                %s514 = sadd.s32 1, %s510
              $region100: #{tpu_custom_call.1} parent=93 // loop_footer_branch
                %509 = sbr.rel target = $region96
              $region101: #{tpu_custom_call.1} parent=93 // loop_exit
                _
            $region94: #{tpu_custom_call.1} parent=85 // pred_fallthru
              _
          $region86: #{tpu_custom_call.1} parent=81 // pred_fallthru
            _
          %545 = vnop
        $region82: #{tpu_custom_call.1} parent=31 // pred_fallthru
          _
        // Predicated region
        $region117: #{tpu_custom_call.1} parent=31 // pred_check
          %p546 = pneg %p179
        $region118: #{tpu_custom_call.1} parent=31 // pred_check_branch
          %548 = sbr.rel (%p546) target = $region120
        $region119: #{tpu_custom_call.1} parent=31 // pred_region
          %s549 = smul.addr %s25, 8
          %s550 = sadd.s32 %s26, %s549
          %s551 = smul.addr %s550, 8
          %s552 = scalar_lea.vmem %s5, %s551
          // Predicated region
          $region121: #{tpu_custom_call.1} parent=119 // pred_check
            _
          $region122: #{tpu_custom_call.1} parent=119 // pred_check_branch
            %554 = sbr.rel (0) target = $region124
          $region123: #{tpu_custom_call.1} parent=119 // pred_region
            // Predicated region
            $region125: #{tpu_custom_call.1} parent=123 // pred_check
              _
            $region126: #{tpu_custom_call.1} parent=123 // pred_check_branch
              %556 = sbr.rel (0) target = $region128
            $region127: #{tpu_custom_call.1} parent=123 // pred_region
              // Predicated region
              $region140: #{tpu_custom_call.1} parent=127 // pred_check
                _
              $region141: #{tpu_custom_call.1} parent=127 // pred_check_branch
                %578 = sbr.rel (0) target = $region143
              $region142: #{tpu_custom_call.1} parent=127 // pred_region
                loop: start=0, step=1, limit=1
                $region144: #{tpu_custom_call.1} parent=142 // loop_pre_header
                  _
                $region145: #{tpu_custom_call.1} parent=142 // loop_header
                  %s580 = sphi 0, %s584
                  %p581 = scmp.ge.s32.totalorder %s580, 1
                  %s585 = sphi %s441, %s441
                  %s586 = sphi %s552, %s552
                $region146: #{tpu_custom_call.1} parent=142 // loop_header_branch
                  %583 = sbr.rel (%p581) target = $region150
                $region147: #{tpu_custom_call.1} parent=142 // loop_body
                  %v587 = vld [vmem:[%s585] sm:$0xff]
                  %588 = vst [vmem:[%s586] sm:$0xff] %v587
                  %v589 = vld [vmem:[%s585 + $0x8] sm:$0xff]
                  %590 = vst [vmem:[%s586 + $0x10] sm:$0xff] %v589
                  %v591 = vld [vmem:[%s585 + $0x10] sm:$0xff]
                  %592 = vst [vmem:[%s586 + $0x20] sm:$0xff] %v591
                  %v593 = vld [vmem:[%s585 + $0x18] sm:$0xff]
                  %594 = vst [vmem:[%s586 + $0x30] sm:$0xff] %v593
                $region148: #{tpu_custom_call.1} parent=142 // loop_footer
                  %s584 = sadd.s32 1, %s580
                $region149: #{tpu_custom_call.1} parent=142 // loop_footer_branch
                  %579 = sbr.rel target = $region145
                $region150: #{tpu_custom_call.1} parent=142 // loop_exit
                  _
              $region143: #{tpu_custom_call.1} parent=127 // pred_fallthru
                _
              // Predicated region
              $region151: #{tpu_custom_call.1} parent=127 // pred_check
                _
              $region152: #{tpu_custom_call.1} parent=127 // pred_check_branch
                %596 = sbr.rel target = $region154
              $region153: #{tpu_custom_call.1} parent=127 // pred_region
                _
              $region154: #{tpu_custom_call.1} parent=127 // pred_fallthru
                _
            $region128: #{tpu_custom_call.1} parent=123 // pred_fallthru
              _
            // Predicated region
            $region129: #{tpu_custom_call.1} parent=123 // pred_check
              _
            $region130: #{tpu_custom_call.1} parent=123 // pred_check_branch
              %558 = sbr.rel target = $region132
            $region131: #{tpu_custom_call.1} parent=123 // pred_region
              %s560 = ssub.s32 256, 1
              loop: start=0, step=1, limit=1
              $region133: #{tpu_custom_call.1} parent=131 // loop_pre_header
                _
              $region134: #{tpu_custom_call.1} parent=131 // loop_header
                %s562 = sphi 0, %s566
                %p563 = scmp.ge.s32.totalorder %s562, 1
                %s567 = sphi %s441, %s441
                %s568 = sphi %s552, %s552
              $region135: #{tpu_custom_call.1} parent=131 // loop_header_branch
                %565 = sbr.rel (%p563) target = $region139
              $region136: #{tpu_custom_call.1} parent=131 // loop_body
                %v569 = vld [vmem:[%s567] sm:%s560]
                %570 = vst [vmem:[%s568] sm:%s560] %v569
                %v571 = vld [vmem:[%s567 + $0x8] sm:%s560]
                %572 = vst [vmem:[%s568 + $0x10] sm:%s560] %v571
                %v573 = vld [vmem:[%s567 + $0x10] sm:%s560]
                %574 = vst [vmem:[%s568 + $0x20] sm:%s560] %v573
                %v575 = vld [vmem:[%s567 + $0x18] sm:%s560]
                %576 = vst [vmem:[%s568 + $0x30] sm:%s560] %v575
              $region137: #{tpu_custom_call.1} parent=131 // loop_footer
                %s566 = sadd.s32 1, %s562
              $region138: #{tpu_custom_call.1} parent=131 // loop_footer_branch
                %561 = sbr.rel target = $region134
              $region139: #{tpu_custom_call.1} parent=131 // loop_exit
                _
            $region132: #{tpu_custom_call.1} parent=123 // pred_fallthru
              _
          $region124: #{tpu_custom_call.1} parent=119 // pred_fallthru
            _
          %597 = vnop
        $region120: #{tpu_custom_call.1} parent=31 // pred_fallthru
          _
      $region32: #{tpu_custom_call.1} parent=5 // pred_fallthru
        _
      %p598 = scmp.le.s32.totalorder 2, %s16
      // Predicated region
      $region155: #{tpu_custom_call.1} parent=5 // pred_check
        %p599 = pneg %p598
      $region156: #{tpu_custom_call.1} parent=5 // pred_check_branch
        %601 = sbr.rel (%p599) target = $region158
      $region157: #{tpu_custom_call.1} parent=5 // pred_region
        %s602 = ssub.s32 %s16, 2
        // Predicated region
        $region159: #{tpu_custom_call.1} parent=157 // pred_check
          %p603 = pneg %p129
        $region160: #{tpu_custom_call.1} parent=157 // pred_check_branch
          %605 = sbr.rel (%p603) target = $region162
        $region161: #{tpu_custom_call.1} parent=157 // pred_region
          %s606 = sand.u32 %s114, 1
          %s607 = sand.u32 %s114, 1
          %s608 = smul.addr %s607, 32
          %s609 = scalar_lea.vmem [#allocation6], %s608
        $region162: #{tpu_custom_call.1} parent=157 // pred_fallthru
          _
        // Predicated region
        $region163: #{tpu_custom_call.1} parent=157 // pred_check
          %p610 = pneg %p157
        $region164: #{tpu_custom_call.1} parent=157 // pred_check_branch
          %612 = sbr.rel (%p610) target = $region166
        $region165: #{tpu_custom_call.1} parent=157 // pred_region
          %s613 = sand.u32 %s142, 1
          %s614 = sand.u32 %s142, 1
          %s615 = smul.addr %s614, 32
          %s616 = scalar_lea.vmem [#allocation7], %s615
        $region166: #{tpu_custom_call.1} parent=157 // pred_fallthru
          _
        // Predicated region
        $region167: #{tpu_custom_call.1} parent=157 // pred_check
          %p617 = pneg %p185
        $region168: #{tpu_custom_call.1} parent=157 // pred_check_branch
          %619 = sbr.rel (%p617) target = $region170
        $region169: #{tpu_custom_call.1} parent=157 // pred_region
          %s620 = sand.u32 %s170, 1
          %s621 = sand.u32 %s170, 1
          %s622 = smul.addr %s621, 32
          %s623 = scalar_lea.vmem [#allocation8], %s622
        $region170: #{tpu_custom_call.1} parent=157 // pred_fallthru
          _
      $region158: #{tpu_custom_call.1} parent=5 // pred_fallthru
        _
    $region6: #{tpu_custom_call.1} parent=1 // loop_footer
      %s20 = sadd.s32 1, %s16
    $region7: #{tpu_custom_call.1} parent=1 // loop_footer_branch
      %15 = sbr.rel target = $region3
    $region8: #{tpu_custom_call.1} parent=1 // loop_exit
      _
    %624 = vsyncpa [#allocation3], 1
    %s625 = scalar_lea.sflag [#allocation3], 1
    %626 = vsyncpa %s625, 1
    %627 = vsyncpa [#allocation5], 1

</llo_original>
